<compile_context>
chip_gen: v5e
topology: v5e:2x2
jax: 0.10.0
libtpu: 0.0.40
codegen_flags: <defaults>
</compile_context>

<pallas_src>
import math

import jax
import jax.numpy as jnp
import numpy as np
from jax.experimental import pallas as pl
from jax.experimental.pallas import tpu as pltpu


def lstm_block_kernel(g_ref, whh_ref, o_ref, h_ref, c_ref):
    """Process TT timesteps of one direction's recurrence.

    Grid: (direction, time-block).  Direction is 'parallel' (independent recurrences),
    time is 'arbitrary' (sequential; h/c carried across grid steps in VMEM scratch).

    g_ref  : (TT, B, 4H)  precomputed x @ W_ih^T + b gate slab for this time block
    whh_ref: (H, 4H)      W_hh^T for this direction (time-invariant)
    o_ref  : (TT, B, H)   hidden-state outputs for this time block
    h_ref  : (B, H)       VMEM scratch — carried hidden state
    c_ref  : (B, H)       VMEM scratch — carried cell state
    """
    t = pl.program_id(1)

    @pl.when(t == 0)
    def _():
        h_ref[...] = jnp.zeros_like(h_ref)
        c_ref[...] = jnp.zeros_like(c_ref)

    TT = g_ref.shape[0]
    H = h_ref.shape[-1]
    whh = whh_ref[...]  # load once per block; time-invariant

    def step(s, carry):
        h, c = carry
        # Only the recurrent matmul remains on the sequential critical path.
        gates = g_ref[s] + jnp.dot(h, whh, preferred_element_type=jnp.float32)
        i = jax.nn.sigmoid(gates[:, 0 * H:1 * H])
        f = jax.nn.sigmoid(gates[:, 1 * H:2 * H])
        g = jnp.tanh(gates[:, 2 * H:3 * H])
        o = jax.nn.sigmoid(gates[:, 3 * H:4 * H])
        c = f * c + i * g
        h = o * jnp.tanh(c)
        o_ref[s] = h.astype(o_ref.dtype)
        return h, c

    h, c = jax.lax.fori_loop(0, TT, step, (h_ref[...], c_ref[...]), unroll=True)
    h_ref[...] = h
    c_ref[...] = c


def _pick_time_block(T, target):
    """Largest divisor of T that is <= target (timesteps per grid step)."""
    tt = max(1, min(T, target))
    while T % tt:
        tt -= 1
    return tt


def lstm_bidirectional(x, params, *, time_block=16):
    """Bidirectional single-layer LSTM forward: (T, B, C) -> (T, B, 2H)."""
    T, B, C = x.shape
    whh_t = params["whh_t"]  # (2, H, 4H)
    H = whh_t.shape[1]

    # ---- Hoisted input projection: one big matmul per direction (plain XLA). ----
    xf = x.reshape(T * B, C)
    g_f = (xf @ params["wih_t"][0] + params["bias"][0]).reshape(T, B, 4 * H)
    g_b = (xf @ params["wih_t"][1] + params["bias"][1]).reshape(T, B, 4 * H)
    # Pre-reverse the backward direction's gates so the kernel always runs its
    # recurrence in increasing internal time.
    gates = jnp.stack([g_f, g_b[::-1]], axis=0)  # (2, T, B, 4H)

    TT = _pick_time_block(T, time_block)
    nT = T // TT

    out = pl.pallas_call(
        lstm_block_kernel,
        out_shape=jax.ShapeDtypeStruct((2, T, B, H), x.dtype),
        grid_spec=pltpu.PrefetchScalarGridSpec(
            num_scalar_prefetch=0,
            grid=(2, nT),  # (direction, time-block); time iterates fastest
            in_specs=[
                # Precomputed gate slab for (direction d, time block t).
                pl.BlockSpec((None, TT, B, 4 * H), lambda d, t: (d, t, 0, 0)),
                # W_hh^T for direction d (constant across time).
                pl.BlockSpec((None, H, 4 * H), lambda d, t: (d, 0, 0)),
            ],
            out_specs=pl.BlockSpec((None, TT, B, H), lambda d, t: (d, t, 0, 0)),
            scratch_shapes=[
                pltpu.VMEM((B, H), jnp.float32),  # carried h state
                pltpu.VMEM((B, H), jnp.float32),  # carried c state
            ],
        ),
        compiler_params=pltpu.CompilerParams(
            dimension_semantics=("parallel", "arbitrary")),
    )(gates, whh_t)

    # Backward outputs were produced in reversed internal time; flip back & concat
    # into PyTorch's (T, B, 2H) layout.
    return jnp.concatenate([out[0], out[1][::-1]], axis=-1)


def xavier_normal(key, shape):
    # PyTorch xavier_normal_ for a 2D (fan_out, fan_in) tensor.
    fan_out, fan_in = shape
    std = math.sqrt(2.0 / (fan_in + fan_out))
    return std * jax.random.normal(key, shape, dtype=jnp.float32)


def make_params(key, input_channel, hidden_dim):
    H, C = hidden_dim, input_channel
    k = jax.random.split(key, 4)
    # PyTorch layout: weight_ih (4H, C), weight_hh (4H, H); biases zeroed in __init__.
    wih_f = xavier_normal(k[0], (4 * H, C))
    whh_f = xavier_normal(k[1], (4 * H, H))
    wih_b = xavier_normal(k[2], (4 * H, C))
    whh_b = xavier_normal(k[3], (4 * H, H))
    return {
        "wih_t": jnp.stack([wih_f.T, wih_b.T]),       # (2, C, 4H)
        "whh_t": jnp.stack([whh_f.T, whh_b.T]),       # (2, H, 4H)
        "bias": jnp.zeros((2, 4 * H), jnp.float32),   # b_ih + b_hh (both zero)
        # raw copies for the pure-JAX reference
        "wih_f": wih_f, "whh_f": whh_f, "wih_b": wih_b, "whh_b": whh_b,
    }


def lstm_reference(x, wih, whh):
    """Pure-JAX single-direction LSTM reference (PyTorch gate order i,f,g,o)."""
    T, B, C = x.shape
    H = whh.shape[1]

    def step(carry, xt):
        h, c = carry
        gates = xt @ wih.T + h @ whh.T
        i = jax.nn.sigmoid(gates[:, 0:H])
        f = jax.nn.sigmoid(gates[:, H:2 * H])
        g = jnp.tanh(gates[:, 2 * H:3 * H])
        o = jax.nn.sigmoid(gates[:, 3 * H:4 * H])
        c = f * c + i * g
        h = o * jnp.tanh(c)
        return (h, c), h

    init = (jnp.zeros((B, H), jnp.float32), jnp.zeros((B, H), jnp.float32))
    _, hs = jax.lax.scan(step, init, x)
    return hs


if __name__ == "__main__":
    T, B, C, H = 8, 4, 16, 32  # seq, batch, input_channel, hidden_dim

    key = jax.random.PRNGKey(0)
    k_x, k_p = jax.random.split(key)
    x = jax.random.normal(k_x, (T, B, C), dtype=jnp.float32)
    params = make_params(k_p, C, H)

    out = jax.jit(lstm_bidirectional)(x, params)
    out = jax.block_until_ready(out)
    assert out.shape == (T, B, 2 * H), out.shape

    # Pure-JAX reference (bidirectional: backward dir scanned on reversed x, flipped back).
    ref_fwd = lstm_reference(x, params["wih_f"], params["whh_f"])
    ref_bwd = lstm_reference(x[::-1], params["wih_b"], params["whh_b"])[::-1]
    ref = jnp.concatenate([ref_fwd, ref_bwd], axis=-1)

    np.testing.assert_allclose(np.asarray(out), np.asarray(ref),
                               rtol=1e-5, atol=1e-5)
    print("KERNEL_OK")
</pallas_src>

<mosaic_0001>
module attributes {stable_mosaic.version = 11 : i64} {
  func.func @lstm_block_kernel(%arg0: i32, %arg1: i32, %arg2: memref<1x8x4x128xf32, #tpu.memory_space<vmem>>, %arg3: memref<1x32x128xf32, #tpu.memory_space<vmem>>, %arg4: memref<1x8x4x32xf32, #tpu.memory_space<vmem>>, %arg5: memref<4x32xf32, #tpu.memory_space<vmem>>, %arg6: memref<4x32xf32, #tpu.memory_space<vmem>>) attributes {dimension_semantics = [#tpu.dimension_semantics<parallel>, #tpu.dimension_semantics<arbitrary>], iteration_bounds = array<i64: 2, 1>, scalar_prefetch = 0 : i64, scratch_operands = 2 : i64, tpu.core_type = #tpu.core_type<tc>, window_params = [{transform_indices = @transform_0, window_bounds = array<i64: 1, 8, 4, 128>}, {transform_indices = @transform_1, window_bounds = array<i64: 1, 32, 128>}, {transform_indices = @transform_2, window_bounds = array<i64: 1, 8, 4, 32>}]} {
    %c0_i32 = arith.constant 0 : i32
    %0 = arith.cmpi eq, %arg1, %c0_i32 : i32
    %1 = arith.extui %0 : i1 to i32
    %c0_i32_0 = arith.constant 0 : i32
    %2 = arith.cmpi ne, %1, %c0_i32_0 : i32
    scf.if %2 {
      %cst_91 = arith.constant 0.000000e+00 : f32
      %281 = vector.broadcast %cst_91 : f32 to vector<4x32xf32>
      %c0_92 = arith.constant 0 : index
      %c0_93 = arith.constant 0 : index
      %282 = vector.load %arg5[%c0_92, %c0_93] : memref<4x32xf32, #tpu.memory_space<vmem>>, vector<4x32xf32>
      tpu.vector_store %arg5[%c0_92, %c0_93], %281 {strides = array<i32>} : memref<4x32xf32, #tpu.memory_space<vmem>>, vector<4x32xf32>,
      %cst_94 = arith.constant 0.000000e+00 : f32
      %283 = vector.broadcast %cst_94 : f32 to vector<4x32xf32>
      %c0_95 = arith.constant 0 : index
      %c0_96 = arith.constant 0 : index
      %284 = vector.load %arg6[%c0_95, %c0_96] : memref<4x32xf32, #tpu.memory_space<vmem>>, vector<4x32xf32>
      tpu.vector_store %arg6[%c0_95, %c0_96], %283 {strides = array<i32>} : memref<4x32xf32, #tpu.memory_space<vmem>>, vector<4x32xf32>,
    } else {
    }
    %c0 = arith.constant 0 : index
    %c0_1 = arith.constant 0 : index
    %c0_2 = arith.constant 0 : index
    %3 = vector.load %arg3[%c0, %c0_1, %c0_2] : memref<1x32x128xf32, #tpu.memory_space<vmem>>, vector<1x32x128xf32>
    %4 = vector.shape_cast %3 : vector<1x32x128xf32> to vector<32x128xf32>
    %c0_3 = arith.constant 0 : index
    %c0_4 = arith.constant 0 : index
    %5 = vector.load %arg5[%c0_3, %c0_4] : memref<4x32xf32, #tpu.memory_space<vmem>>, vector<4x32xf32>
    %c0_5 = arith.constant 0 : index
    %c0_6 = arith.constant 0 : index
    %6 = vector.load %arg6[%c0_5, %c0_6] : memref<4x32xf32, #tpu.memory_space<vmem>>, vector<4x32xf32>
    %c0_i32_7 = arith.constant 0 : i32
    %c0_8 = arith.constant 0 : index
    %7 = arith.index_cast %c0_i32_7 : i32 to index
    %c0_9 = arith.constant 0 : index
    %c0_10 = arith.constant 0 : index
    %8 = vector.load %arg2[%c0_8, %7, %c0_9, %c0_10] : memref<1x8x4x128xf32, #tpu.memory_space<vmem>>, vector<1x1x4x128xf32>
    %9 = vector.shape_cast %8 : vector<1x1x4x128xf32> to vector<4x128xf32>
    %cst = arith.constant dense<0.000000e+00> : vector<4x128xf32>
    %10 = tpu.matmul %5, %4, %cst {dimension_numbers = #tpu.dot_dimension_numbers<[1], [0], [0], [1], [0, 0, 1, 1], [], []>} : vector<4x32xf32>, vector<32x128xf32>, vector<4x128xf32> -> vector<4x128xf32>
    %11 = arith.addf %9, %10 : vector<4x128xf32>
    %12 = vector.extract_strided_slice %11 {offsets = [0, 0], sizes = [4, 32], strides = [1, 1]} : vector<4x128xf32> to vector<4x32xf32>
    %13 = arith.negf %12 : vector<4x32xf32>
    %14 = math.exp %13 : vector<4x32xf32>
    %cst_11 = arith.constant 1.000000e+00 : f32
    %15 = vector.broadcast %cst_11 : f32 to vector<4x32xf32>
    %16 = arith.addf %15, %14 : vector<4x32xf32>
    %17 = arith.divf %15, %16 : vector<4x32xf32>
    %18 = vector.extract_strided_slice %11 {offsets = [0, 32], sizes = [4, 32], strides = [1, 1]} : vector<4x128xf32> to vector<4x32xf32>
    %19 = arith.negf %18 : vector<4x32xf32>
    %20 = math.exp %19 : vector<4x32xf32>
    %cst_12 = arith.constant 1.000000e+00 : f32
    %21 = vector.broadcast %cst_12 : f32 to vector<4x32xf32>
    %22 = arith.addf %21, %20 : vector<4x32xf32>
    %23 = arith.divf %21, %22 : vector<4x32xf32>
    %24 = vector.extract_strided_slice %11 {offsets = [0, 64], sizes = [4, 32], strides = [1, 1]} : vector<4x128xf32> to vector<4x32xf32>
    %25 = math.tanh %24 : vector<4x32xf32>
    %26 = vector.extract_strided_slice %11 {offsets = [0, 96], sizes = [4, 32], strides = [1, 1]} : vector<4x128xf32> to vector<4x32xf32>
    %27 = arith.negf %26 : vector<4x32xf32>
    %28 = math.exp %27 : vector<4x32xf32>
    %cst_13 = arith.constant 1.000000e+00 : f32
    %29 = vector.broadcast %cst_13 : f32 to vector<4x32xf32>
    %30 = arith.addf %29, %28 : vector<4x32xf32>
    %31 = arith.divf %29, %30 : vector<4x32xf32>
    %32 = arith.mulf %23, %6 : vector<4x32xf32>
    %33 = arith.mulf %17, %25 : vector<4x32xf32>
    %34 = arith.addf %32, %33 : vector<4x32xf32>
    %35 = math.tanh %34 : vector<4x32xf32>
    %36 = arith.mulf %31, %35 : vector<4x32xf32>
    %c0_14 = arith.constant 0 : index
    %37 = arith.index_cast %c0_i32_7 : i32 to index
    %c0_15 = arith.constant 0 : index
    %c0_16 = arith.constant 0 : index
    %38 = vector.load %arg4[%c0_14, %37, %c0_15, %c0_16] : memref<1x8x4x32xf32, #tpu.memory_space<vmem>>, vector<1x1x4x32xf32>
    %39 = vector.shape_cast %38 : vector<1x1x4x32xf32> to vector<4x32xf32>
    %40 = vector.shape_cast %36 : vector<4x32xf32> to vector<1x1x4x32xf32>
    tpu.vector_store %arg4[%c0_14, %37, %c0_15, %c0_16], %40 {strides = array<i32>} : memref<1x8x4x32xf32, #tpu.memory_space<vmem>>, vector<1x1x4x32xf32>,
    %c1_i32 = arith.constant 1 : i32
    %c0_17 = arith.constant 0 : index
    %41 = arith.index_cast %c1_i32 : i32 to index
    %c0_18 = arith.constant 0 : index
    %c0_19 = arith.constant 0 : index
    %42 = vector.load %arg2[%c0_17, %41, %c0_18, %c0_19] : memref<1x8x4x128xf32, #tpu.memory_space<vmem>>, vector<1x1x4x128xf32>
    %43 = vector.shape_cast %42 : vector<1x1x4x128xf32> to vector<4x128xf32>
    %cst_20 = arith.constant dense<0.000000e+00> : vector<4x128xf32>
    %44 = tpu.matmul %36, %4, %cst_20 {dimension_numbers = #tpu.dot_dimension_numbers<[1], [0], [0], [1], [0, 0, 1, 1], [], []>} : vector<4x32xf32>, vector<32x128xf32>, vector<4x128xf32> -> vector<4x128xf32>
    %45 = arith.addf %43, %44 : vector<4x128xf32>
    %46 = vector.extract_strided_slice %45 {offsets = [0, 0], sizes = [4, 32], strides = [1, 1]} : vector<4x128xf32> to vector<4x32xf32>
    %47 = arith.negf %46 : vector<4x32xf32>
    %48 = math.exp %47 : vector<4x32xf32>
    %cst_21 = arith.constant 1.000000e+00 : f32
    %49 = vector.broadcast %cst_21 : f32 to vector<4x32xf32>
    %50 = arith.addf %49, %48 : vector<4x32xf32>
    %51 = arith.divf %49, %50 : vector<4x32xf32>
    %52 = vector.extract_strided_slice %45 {offsets = [0, 32], sizes = [4, 32], strides = [1, 1]} : vector<4x128xf32> to vector<4x32xf32>
    %53 = arith.negf %52 : vector<4x32xf32>
    %54 = math.exp %53 : vector<4x32xf32>
    %cst_22 = arith.constant 1.000000e+00 : f32
    %55 = vector.broadcast %cst_22 : f32 to vector<4x32xf32>
    %56 = arith.addf %55, %54 : vector<4x32xf32>
    %57 = arith.divf %55, %56 : vector<4x32xf32>
    %58 = vector.extract_strided_slice %45 {offsets = [0, 64], sizes = [4, 32], strides = [1, 1]} : vector<4x128xf32> to vector<4x32xf32>
    %59 = math.tanh %58 : vector<4x32xf32>
    %60 = vector.extract_strided_slice %45 {offsets = [0, 96], sizes = [4, 32], strides = [1, 1]} : vector<4x128xf32> to vector<4x32xf32>
    %61 = arith.negf %60 : vector<4x32xf32>
    %62 = math.exp %61 : vector<4x32xf32>
    %cst_23 = arith.constant 1.000000e+00 : f32
    %63 = vector.broadcast %cst_23 : f32 to vector<4x32xf32>
    %64 = arith.addf %63, %62 : vector<4x32xf32>
    %65 = arith.divf %63, %64 : vector<4x32xf32>
    %66 = arith.mulf %57, %34 : vector<4x32xf32>
    %67 = arith.mulf %51, %59 : vector<4x32xf32>
    %68 = arith.addf %66, %67 : vector<4x32xf32>
    %69 = math.tanh %68 : vector<4x32xf32>
    %70 = arith.mulf %65, %69 : vector<4x32xf32>
    %c0_24 = arith.constant 0 : index
    %71 = arith.index_cast %c1_i32 : i32 to index
    %c0_25 = arith.constant 0 : index
    %c0_26 = arith.constant 0 : index
    %72 = vector.load %arg4[%c0_24, %71, %c0_25, %c0_26] : memref<1x8x4x32xf32, #tpu.memory_space<vmem>>, vector<1x1x4x32xf32>
    %73 = vector.shape_cast %72 : vector<1x1x4x32xf32> to vector<4x32xf32>
    %74 = vector.shape_cast %70 : vector<4x32xf32> to vector<1x1x4x32xf32>
    tpu.vector_store %arg4[%c0_24, %71, %c0_25, %c0_26], %74 {strides = array<i32>} : memref<1x8x4x32xf32, #tpu.memory_space<vmem>>, vector<1x1x4x32xf32>,
    %c2_i32 = arith.constant 2 : i32
    %c0_27 = arith.constant 0 : index
    %75 = arith.index_cast %c2_i32 : i32 to index
    %c0_28 = arith.constant 0 : index
    %c0_29 = arith.constant 0 : index
    %76 = vector.load %arg2[%c0_27, %75, %c0_28, %c0_29] : memref<1x8x4x128xf32, #tpu.memory_space<vmem>>, vector<1x1x4x128xf32>
    %77 = vector.shape_cast %76 : vector<1x1x4x128xf32> to vector<4x128xf32>
    %cst_30 = arith.constant dense<0.000000e+00> : vector<4x128xf32>
    %78 = tpu.matmul %70, %4, %cst_30 {dimension_numbers = #tpu.dot_dimension_numbers<[1], [0], [0], [1], [0, 0, 1, 1], [], []>} : vector<4x32xf32>, vector<32x128xf32>, vector<4x128xf32> -> vector<4x128xf32>
    %79 = arith.addf %77, %78 : vector<4x128xf32>
    %80 = vector.extract_strided_slice %79 {offsets = [0, 0], sizes = [4, 32], strides = [1, 1]} : vector<4x128xf32> to vector<4x32xf32>
    %81 = arith.negf %80 : vector<4x32xf32>
    %82 = math.exp %81 : vector<4x32xf32>
    %cst_31 = arith.constant 1.000000e+00 : f32
    %83 = vector.broadcast %cst_31 : f32 to vector<4x32xf32>
    %84 = arith.addf %83, %82 : vector<4x32xf32>
    %85 = arith.divf %83, %84 : vector<4x32xf32>
    %86 = vector.extract_strided_slice %79 {offsets = [0, 32], sizes = [4, 32], strides = [1, 1]} : vector<4x128xf32> to vector<4x32xf32>
    %87 = arith.negf %86 : vector<4x32xf32>
    %88 = math.exp %87 : vector<4x32xf32>
    %cst_32 = arith.constant 1.000000e+00 : f32
    %89 = vector.broadcast %cst_32 : f32 to vector<4x32xf32>
    %90 = arith.addf %89, %88 : vector<4x32xf32>
    %91 = arith.divf %89, %90 : vector<4x32xf32>
    %92 = vector.extract_strided_slice %79 {offsets = [0, 64], sizes = [4, 32], strides = [1, 1]} : vector<4x128xf32> to vector<4x32xf32>
    %93 = math.tanh %92 : vector<4x32xf32>
    %94 = vector.extract_strided_slice %79 {offsets = [0, 96], sizes = [4, 32], strides = [1, 1]} : vector<4x128xf32> to vector<4x32xf32>
    %95 = arith.negf %94 : vector<4x32xf32>
    %96 = math.exp %95 : vector<4x32xf32>
    %cst_33 = arith.constant 1.000000e+00 : f32
    %97 = vector.broadcast %cst_33 : f32 to vector<4x32xf32>
    %98 = arith.addf %97, %96 : vector<4x32xf32>
    %99 = arith.divf %97, %98 : vector<4x32xf32>
    %100 = arith.mulf %91, %68 : vector<4x32xf32>
    %101 = arith.mulf %85, %93 : vector<4x32xf32>
    %102 = arith.addf %100, %101 : vector<4x32xf32>
    %103 = math.tanh %102 : vector<4x32xf32>
    %104 = arith.mulf %99, %103 : vector<4x32xf32>
    %c0_34 = arith.constant 0 : index
    %105 = arith.index_cast %c2_i32 : i32 to index
    %c0_35 = arith.constant 0 : index
    %c0_36 = arith.constant 0 : index
    %106 = vector.load %arg4[%c0_34, %105, %c0_35, %c0_36] : memref<1x8x4x32xf32, #tpu.memory_space<vmem>>, vector<1x1x4x32xf32>
    %107 = vector.shape_cast %106 : vector<1x1x4x32xf32> to vector<4x32xf32>
    %108 = vector.shape_cast %104 : vector<4x32xf32> to vector<1x1x4x32xf32>
    tpu.vector_store %arg4[%c0_34, %105, %c0_35, %c0_36], %108 {strides = array<i32>} : memref<1x8x4x32xf32, #tpu.memory_space<vmem>>, vector<1x1x4x32xf32>,
    %c3_i32 = arith.constant 3 : i32
    %c0_37 = arith.constant 0 : index
    %109 = arith.index_cast %c3_i32 : i32 to index
    %c0_38 = arith.constant 0 : index
    %c0_39 = arith.constant 0 : index
    %110 = vector.load %arg2[%c0_37, %109, %c0_38, %c0_39] : memref<1x8x4x128xf32, #tpu.memory_space<vmem>>, vector<1x1x4x128xf32>
    %111 = vector.shape_cast %110 : vector<1x1x4x128xf32> to vector<4x128xf32>
    %cst_40 = arith.constant dense<0.000000e+00> : vector<4x128xf32>
    %112 = tpu.matmul %104, %4, %cst_40 {dimension_numbers = #tpu.dot_dimension_numbers<[1], [0], [0], [1], [0, 0, 1, 1], [], []>} : vector<4x32xf32>, vector<32x128xf32>, vector<4x128xf32> -> vector<4x128xf32>
    %113 = arith.addf %111, %112 : vector<4x128xf32>
    %114 = vector.extract_strided_slice %113 {offsets = [0, 0], sizes = [4, 32], strides = [1, 1]} : vector<4x128xf32> to vector<4x32xf32>
    %115 = arith.negf %114 : vector<4x32xf32>
    %116 = math.exp %115 : vector<4x32xf32>
    %cst_41 = arith.constant 1.000000e+00 : f32
    %117 = vector.broadcast %cst_41 : f32 to vector<4x32xf32>
    %118 = arith.addf %117, %116 : vector<4x32xf32>
    %119 = arith.divf %117, %118 : vector<4x32xf32>
    %120 = vector.extract_strided_slice %113 {offsets = [0, 32], sizes = [4, 32], strides = [1, 1]} : vector<4x128xf32> to vector<4x32xf32>
    %121 = arith.negf %120 : vector<4x32xf32>
    %122 = math.exp %121 : vector<4x32xf32>
    %cst_42 = arith.constant 1.000000e+00 : f32
    %123 = vector.broadcast %cst_42 : f32 to vector<4x32xf32>
    %124 = arith.addf %123, %122 : vector<4x32xf32>
    %125 = arith.divf %123, %124 : vector<4x32xf32>
    %126 = vector.extract_strided_slice %113 {offsets = [0, 64], sizes = [4, 32], strides = [1, 1]} : vector<4x128xf32> to vector<4x32xf32>
    %127 = math.tanh %126 : vector<4x32xf32>
    %128 = vector.extract_strided_slice %113 {offsets = [0, 96], sizes = [4, 32], strides = [1, 1]} : vector<4x128xf32> to vector<4x32xf32>
    %129 = arith.negf %128 : vector<4x32xf32>
    %130 = math.exp %129 : vector<4x32xf32>
    %cst_43 = arith.constant 1.000000e+00 : f32
    %131 = vector.broadcast %cst_43 : f32 to vector<4x32xf32>
    %132 = arith.addf %131, %130 : vector<4x32xf32>
    %133 = arith.divf %131, %132 : vector<4x32xf32>
    %134 = arith.mulf %125, %102 : vector<4x32xf32>
    %135 = arith.mulf %119, %127 : vector<4x32xf32>
    %136 = arith.addf %134, %135 : vector<4x32xf32>
    %137 = math.tanh %136 : vector<4x32xf32>
    %138 = arith.mulf %133, %137 : vector<4x32xf32>
    %c0_44 = arith.constant 0 : index
    %139 = arith.index_cast %c3_i32 : i32 to index
    %c0_45 = arith.constant 0 : index
    %c0_46 = arith.constant 0 : index
    %140 = vector.load %arg4[%c0_44, %139, %c0_45, %c0_46] : memref<1x8x4x32xf32, #tpu.memory_space<vmem>>, vector<1x1x4x32xf32>
    %141 = vector.shape_cast %140 : vector<1x1x4x32xf32> to vector<4x32xf32>
    %142 = vector.shape_cast %138 : vector<4x32xf32> to vector<1x1x4x32xf32>
    tpu.vector_store %arg4[%c0_44, %139, %c0_45, %c0_46], %142 {strides = array<i32>} : memref<1x8x4x32xf32, #tpu.memory_space<vmem>>, vector<1x1x4x32xf32>,
    %c4_i32 = arith.constant 4 : i32
    %c0_47 = arith.constant 0 : index
    %143 = arith.index_cast %c4_i32 : i32 to index
    %c0_48 = arith.constant 0 : index
    %c0_49 = arith.constant 0 : index
    %144 = vector.load %arg2[%c0_47, %143, %c0_48, %c0_49] : memref<1x8x4x128xf32, #tpu.memory_space<vmem>>, vector<1x1x4x128xf32>
    %145 = vector.shape_cast %144 : vector<1x1x4x128xf32> to vector<4x128xf32>
    %cst_50 = arith.constant dense<0.000000e+00> : vector<4x128xf32>
    %146 = tpu.matmul %138, %4, %cst_50 {dimension_numbers = #tpu.dot_dimension_numbers<[1], [0], [0], [1], [0, 0, 1, 1], [], []>} : vector<4x32xf32>, vector<32x128xf32>, vector<4x128xf32> -> vector<4x128xf32>
    %147 = arith.addf %145, %146 : vector<4x128xf32>
    %148 = vector.extract_strided_slice %147 {offsets = [0, 0], sizes = [4, 32], strides = [1, 1]} : vector<4x128xf32> to vector<4x32xf32>
    %149 = arith.negf %148 : vector<4x32xf32>
    %150 = math.exp %149 : vector<4x32xf32>
    %cst_51 = arith.constant 1.000000e+00 : f32
    %151 = vector.broadcast %cst_51 : f32 to vector<4x32xf32>
    %152 = arith.addf %151, %150 : vector<4x32xf32>
    %153 = arith.divf %151, %152 : vector<4x32xf32>
    %154 = vector.extract_strided_slice %147 {offsets = [0, 32], sizes = [4, 32], strides = [1, 1]} : vector<4x128xf32> to vector<4x32xf32>
    %155 = arith.negf %154 : vector<4x32xf32>
    %156 = math.exp %155 : vector<4x32xf32>
    %cst_52 = arith.constant 1.000000e+00 : f32
    %157 = vector.broadcast %cst_52 : f32 to vector<4x32xf32>
    %158 = arith.addf %157, %156 : vector<4x32xf32>
    %159 = arith.divf %157, %158 : vector<4x32xf32>
    %160 = vector.extract_strided_slice %147 {offsets = [0, 64], sizes = [4, 32], strides = [1, 1]} : vector<4x128xf32> to vector<4x32xf32>
    %161 = math.tanh %160 : vector<4x32xf32>
    %162 = vector.extract_strided_slice %147 {offsets = [0, 96], sizes = [4, 32], strides = [1, 1]} : vector<4x128xf32> to vector<4x32xf32>
    %163 = arith.negf %162 : vector<4x32xf32>
    %164 = math.exp %163 : vector<4x32xf32>
    %cst_53 = arith.constant 1.000000e+00 : f32
    %165 = vector.broadcast %cst_53 : f32 to vector<4x32xf32>
    %166 = arith.addf %165, %164 : vector<4x32xf32>
    %167 = arith.divf %165, %166 : vector<4x32xf32>
    %168 = arith.mulf %159, %136 : vector<4x32xf32>
    %169 = arith.mulf %153, %161 : vector<4x32xf32>
    %170 = arith.addf %168, %169 : vector<4x32xf32>
    %171 = math.tanh %170 : vector<4x32xf32>
    %172 = arith.mulf %167, %171 : vector<4x32xf32>
    %c0_54 = arith.constant 0 : index
    %173 = arith.index_cast %c4_i32 : i32 to index
    %c0_55 = arith.constant 0 : index
    %c0_56 = arith.constant 0 : index
    %174 = vector.load %arg4[%c0_54, %173, %c0_55, %c0_56] : memref<1x8x4x32xf32, #tpu.memory_space<vmem>>, vector<1x1x4x32xf32>
    %175 = vector.shape_cast %174 : vector<1x1x4x32xf32> to vector<4x32xf32>
    %176 = vector.shape_cast %172 : vector<4x32xf32> to vector<1x1x4x32xf32>
    tpu.vector_store %arg4[%c0_54, %173, %c0_55, %c0_56], %176 {strides = array<i32>} : memref<1x8x4x32xf32, #tpu.memory_space<vmem>>, vector<1x1x4x32xf32>,
    %c5_i32 = arith.constant 5 : i32
    %c0_57 = arith.constant 0 : index
    %177 = arith.index_cast %c5_i32 : i32 to index
    %c0_58 = arith.constant 0 : index
    %c0_59 = arith.constant 0 : index
    %178 = vector.load %arg2[%c0_57, %177, %c0_58, %c0_59] : memref<1x8x4x128xf32, #tpu.memory_space<vmem>>, vector<1x1x4x128xf32>
    %179 = vector.shape_cast %178 : vector<1x1x4x128xf32> to vector<4x128xf32>
    %cst_60 = arith.constant dense<0.000000e+00> : vector<4x128xf32>
    %180 = tpu.matmul %172, %4, %cst_60 {dimension_numbers = #tpu.dot_dimension_numbers<[1], [0], [0], [1], [0, 0, 1, 1], [], []>} : vector<4x32xf32>, vector<32x128xf32>, vector<4x128xf32> -> vector<4x128xf32>
    %181 = arith.addf %179, %180 : vector<4x128xf32>
    %182 = vector.extract_strided_slice %181 {offsets = [0, 0], sizes = [4, 32], strides = [1, 1]} : vector<4x128xf32> to vector<4x32xf32>
    %183 = arith.negf %182 : vector<4x32xf32>
    %184 = math.exp %183 : vector<4x32xf32>
    %cst_61 = arith.constant 1.000000e+00 : f32
    %185 = vector.broadcast %cst_61 : f32 to vector<4x32xf32>
    %186 = arith.addf %185, %184 : vector<4x32xf32>
    %187 = arith.divf %185, %186 : vector<4x32xf32>
    %188 = vector.extract_strided_slice %181 {offsets = [0, 32], sizes = [4, 32], strides = [1, 1]} : vector<4x128xf32> to vector<4x32xf32>
    %189 = arith.negf %188 : vector<4x32xf32>
    %190 = math.exp %189 : vector<4x32xf32>
    %cst_62 = arith.constant 1.000000e+00 : f32
    %191 = vector.broadcast %cst_62 : f32 to vector<4x32xf32>
    %192 = arith.addf %191, %190 : vector<4x32xf32>
    %193 = arith.divf %191, %192 : vector<4x32xf32>
    %194 = vector.extract_strided_slice %181 {offsets = [0, 64], sizes = [4, 32], strides = [1, 1]} : vector<4x128xf32> to vector<4x32xf32>
    %195 = math.tanh %194 : vector<4x32xf32>
    %196 = vector.extract_strided_slice %181 {offsets = [0, 96], sizes = [4, 32], strides = [1, 1]} : vector<4x128xf32> to vector<4x32xf32>
    %197 = arith.negf %196 : vector<4x32xf32>
    %198 = math.exp %197 : vector<4x32xf32>
    %cst_63 = arith.constant 1.000000e+00 : f32
    %199 = vector.broadcast %cst_63 : f32 to vector<4x32xf32>
    %200 = arith.addf %199, %198 : vector<4x32xf32>
    %201 = arith.divf %199, %200 : vector<4x32xf32>
    %202 = arith.mulf %193, %170 : vector<4x32xf32>
    %203 = arith.mulf %187, %195 : vector<4x32xf32>
    %204 = arith.addf %202, %203 : vector<4x32xf32>
    %205 = math.tanh %204 : vector<4x32xf32>
    %206 = arith.mulf %201, %205 : vector<4x32xf32>
    %c0_64 = arith.constant 0 : index
    %207 = arith.index_cast %c5_i32 : i32 to index
    %c0_65 = arith.constant 0 : index
    %c0_66 = arith.constant 0 : index
    %208 = vector.load %arg4[%c0_64, %207, %c0_65, %c0_66] : memref<1x8x4x32xf32, #tpu.memory_space<vmem>>, vector<1x1x4x32xf32>
    %209 = vector.shape_cast %208 : vector<1x1x4x32xf32> to vector<4x32xf32>
    %210 = vector.shape_cast %206 : vector<4x32xf32> to vector<1x1x4x32xf32>
    tpu.vector_store %arg4[%c0_64, %207, %c0_65, %c0_66], %210 {strides = array<i32>} : memref<1x8x4x32xf32, #tpu.memory_space<vmem>>, vector<1x1x4x32xf32>,
    %c6_i32 = arith.constant 6 : i32
    %c0_67 = arith.constant 0 : index
    %211 = arith.index_cast %c6_i32 : i32 to index
    %c0_68 = arith.constant 0 : index
    %c0_69 = arith.constant 0 : index
    %212 = vector.load %arg2[%c0_67, %211, %c0_68, %c0_69] : memref<1x8x4x128xf32, #tpu.memory_space<vmem>>, vector<1x1x4x128xf32>
    %213 = vector.shape_cast %212 : vector<1x1x4x128xf32> to vector<4x128xf32>
    %cst_70 = arith.constant dense<0.000000e+00> : vector<4x128xf32>
    %214 = tpu.matmul %206, %4, %cst_70 {dimension_numbers = #tpu.dot_dimension_numbers<[1], [0], [0], [1], [0, 0, 1, 1], [], []>} : vector<4x32xf32>, vector<32x128xf32>, vector<4x128xf32> -> vector<4x128xf32>
    %215 = arith.addf %213, %214 : vector<4x128xf32>
    %216 = vector.extract_strided_slice %215 {offsets = [0, 0], sizes = [4, 32], strides = [1, 1]} : vector<4x128xf32> to vector<4x32xf32>
    %217 = arith.negf %216 : vector<4x32xf32>
    %218 = math.exp %217 : vector<4x32xf32>
    %cst_71 = arith.constant 1.000000e+00 : f32
    %219 = vector.broadcast %cst_71 : f32 to vector<4x32xf32>
    %220 = arith.addf %219, %218 : vector<4x32xf32>
    %221 = arith.divf %219, %220 : vector<4x32xf32>
    %222 = vector.extract_strided_slice %215 {offsets = [0, 32], sizes = [4, 32], strides = [1, 1]} : vector<4x128xf32> to vector<4x32xf32>
    %223 = arith.negf %222 : vector<4x32xf32>
    %224 = math.exp %223 : vector<4x32xf32>
    %cst_72 = arith.constant 1.000000e+00 : f32
    %225 = vector.broadcast %cst_72 : f32 to vector<4x32xf32>
    %226 = arith.addf %225, %224 : vector<4x32xf32>
    %227 = arith.divf %225, %226 : vector<4x32xf32>
    %228 = vector.extract_strided_slice %215 {offsets = [0, 64], sizes = [4, 32], strides = [1, 1]} : vector<4x128xf32> to vector<4x32xf32>
    %229 = math.tanh %228 : vector<4x32xf32>
    %230 = vector.extract_strided_slice %215 {offsets = [0, 96], sizes = [4, 32], strides = [1, 1]} : vector<4x128xf32> to vector<4x32xf32>
    %231 = arith.negf %230 : vector<4x32xf32>
    %232 = math.exp %231 : vector<4x32xf32>
    %cst_73 = arith.constant 1.000000e+00 : f32
    %233 = vector.broadcast %cst_73 : f32 to vector<4x32xf32>
    %234 = arith.addf %233, %232 : vector<4x32xf32>
    %235 = arith.divf %233, %234 : vector<4x32xf32>
    %236 = arith.mulf %227, %204 : vector<4x32xf32>
    %237 = arith.mulf %221, %229 : vector<4x32xf32>
    %238 = arith.addf %236, %237 : vector<4x32xf32>
    %239 = math.tanh %238 : vector<4x32xf32>
    %240 = arith.mulf %235, %239 : vector<4x32xf32>
    %c0_74 = arith.constant 0 : index
    %241 = arith.index_cast %c6_i32 : i32 to index
    %c0_75 = arith.constant 0 : index
    %c0_76 = arith.constant 0 : index
    %242 = vector.load %arg4[%c0_74, %241, %c0_75, %c0_76] : memref<1x8x4x32xf32, #tpu.memory_space<vmem>>, vector<1x1x4x32xf32>
    %243 = vector.shape_cast %242 : vector<1x1x4x32xf32> to vector<4x32xf32>
    %244 = vector.shape_cast %240 : vector<4x32xf32> to vector<1x1x4x32xf32>
    tpu.vector_store %arg4[%c0_74, %241, %c0_75, %c0_76], %244 {strides = array<i32>} : memref<1x8x4x32xf32, #tpu.memory_space<vmem>>, vector<1x1x4x32xf32>,
    %c7_i32 = arith.constant 7 : i32
    %c0_77 = arith.constant 0 : index
    %245 = arith.index_cast %c7_i32 : i32 to index
    %c0_78 = arith.constant 0 : index
    %c0_79 = arith.constant 0 : index
    %246 = vector.load %arg2[%c0_77, %245, %c0_78, %c0_79] : memref<1x8x4x128xf32, #tpu.memory_space<vmem>>, vector<1x1x4x128xf32>
    %247 = vector.shape_cast %246 : vector<1x1x4x128xf32> to vector<4x128xf32>
    %cst_80 = arith.constant dense<0.000000e+00> : vector<4x128xf32>
    %248 = tpu.matmul %240, %4, %cst_80 {dimension_numbers = #tpu.dot_dimension_numbers<[1], [0], [0], [1], [0, 0, 1, 1], [], []>} : vector<4x32xf32>, vector<32x128xf32>, vector<4x128xf32> -> vector<4x128xf32>
    %249 = arith.addf %247, %248 : vector<4x128xf32>
    %250 = vector.extract_strided_slice %249 {offsets = [0, 0], sizes = [4, 32], strides = [1, 1]} : vector<4x128xf32> to vector<4x32xf32>
    %251 = arith.negf %250 : vector<4x32xf32>
    %252 = math.exp %251 : vector<4x32xf32>
    %cst_81 = arith.constant 1.000000e+00 : f32
    %253 = vector.broadcast %cst_81 : f32 to vector<4x32xf32>
    %254 = arith.addf %253, %252 : vector<4x32xf32>
    %255 = arith.divf %253, %254 : vector<4x32xf32>
    %256 = vector.extract_strided_slice %249 {offsets = [0, 32], sizes = [4, 32], strides = [1, 1]} : vector<4x128xf32> to vector<4x32xf32>
    %257 = arith.negf %256 : vector<4x32xf32>
    %258 = math.exp %257 : vector<4x32xf32>
    %cst_82 = arith.constant 1.000000e+00 : f32
    %259 = vector.broadcast %cst_82 : f32 to vector<4x32xf32>
    %260 = arith.addf %259, %258 : vector<4x32xf32>
    %261 = arith.divf %259, %260 : vector<4x32xf32>
    %262 = vector.extract_strided_slice %249 {offsets = [0, 64], sizes = [4, 32], strides = [1, 1]} : vector<4x128xf32> to vector<4x32xf32>
    %263 = math.tanh %262 : vector<4x32xf32>
    %264 = vector.extract_strided_slice %249 {offsets = [0, 96], sizes = [4, 32], strides = [1, 1]} : vector<4x128xf32> to vector<4x32xf32>
    %265 = arith.negf %264 : vector<4x32xf32>
    %266 = math.exp %265 : vector<4x32xf32>
    %cst_83 = arith.constant 1.000000e+00 : f32
    %267 = vector.broadcast %cst_83 : f32 to vector<4x32xf32>
    %268 = arith.addf %267, %266 : vector<4x32xf32>
    %269 = arith.divf %267, %268 : vector<4x32xf32>
    %270 = arith.mulf %261, %238 : vector<4x32xf32>
    %271 = arith.mulf %255, %263 : vector<4x32xf32>
    %272 = arith.addf %270, %271 : vector<4x32xf32>
    %273 = math.tanh %272 : vector<4x32xf32>
    %274 = arith.mulf %269, %273 : vector<4x32xf32>
    %c0_84 = arith.constant 0 : index
    %275 = arith.index_cast %c7_i32 : i32 to index
    %c0_85 = arith.constant 0 : index
    %c0_86 = arith.constant 0 : index
    %276 = vector.load %arg4[%c0_84, %275, %c0_85, %c0_86] : memref<1x8x4x32xf32, #tpu.memory_space<vmem>>, vector<1x1x4x32xf32>
    %277 = vector.shape_cast %276 : vector<1x1x4x32xf32> to vector<4x32xf32>
    %278 = vector.shape_cast %274 : vector<4x32xf32> to vector<1x1x4x32xf32>
    tpu.vector_store %arg4[%c0_84, %275, %c0_85, %c0_86], %278 {strides = array<i32>} : memref<1x8x4x32xf32, #tpu.memory_space<vmem>>, vector<1x1x4x32xf32>,
    %c8_i32 = arith.constant 8 : i32
    %c0_87 = arith.constant 0 : index
    %c0_88 = arith.constant 0 : index
    %279 = vector.load %arg5[%c0_87, %c0_88] : memref<4x32xf32, #tpu.memory_space<vmem>>, vector<4x32xf32>
    tpu.vector_store %arg5[%c0_87, %c0_88], %274 {strides = array<i32>} : memref<4x32xf32, #tpu.memory_space<vmem>>, vector<4x32xf32>,
    %c0_89 = arith.constant 0 : index
    %c0_90 = arith.constant 0 : index
    %280 = vector.load %arg6[%c0_89, %c0_90] : memref<4x32xf32, #tpu.memory_space<vmem>>, vector<4x32xf32>
    tpu.vector_store %arg6[%c0_89, %c0_90], %272 {strides = array<i32>} : memref<4x32xf32, #tpu.memory_space<vmem>>, vector<4x32xf32>,
    return
  }
  func.func @transform_0(%arg0: i32, %arg1: i32) -> (i32, i32, i32, i32) {
    %c0_i32 = arith.constant 0 : i32
    %c0_i32_0 = arith.constant 0 : i32
    %c0_i32_1 = arith.constant 0 : i32
    return %arg0, %arg1, %c0_i32, %c0_i32_0 : i32, i32, i32, i32
  }
  func.func @transform_1(%arg0: i32, %arg1: i32) -> (i32, i32, i32) {
    %c0_i32 = arith.constant 0 : i32
    %c0_i32_0 = arith.constant 0 : i32
    %c0_i32_1 = arith.constant 0 : i32
    return %arg0, %c0_i32, %c0_i32_0 : i32, i32, i32
  }
  func.func @transform_2(%arg0: i32, %arg1: i32) -> (i32, i32, i32, i32) {
    %c0_i32 = arith.constant 0 : i32
    %c0_i32_0 = arith.constant 0 : i32
    %c0_i32_1 = arith.constant 0 : i32
    return %arg0, %arg1, %c0_i32, %c0_i32_0 : i32, i32, i32, i32
  }
}

</mosaic_0001>

<llo_original>
// kernel: lstm_bidirectional.1
$region0: #{lstm_bidirectional.1}
  #allocation0 [shape = 'u32[]', space=smem, size = 0x4, offset = 0x4, fixed_abs, tag = 'smem constant byte address 0x4 - core index']
  #allocation1 [shape = 'u32[72,128]{1,0:T(1,128)}', space=vmem, size = 0x9000, scoped, tag = 'internal scratch']
  #allocation2 [shape = 'f32[4,32]{1,0:T(4,128)}', space=vmem, size = 0x800, scoped, tag = 'scratch operand']
  #allocation3 [shape = 'f32[4,32]{1,0:T(4,128)}', space=vmem, size = 0x800, scoped, tag = 'scratch operand']
  %s0 = inlined_call_operand.vmem [shape: f32[2,8,4,128], index: 0, kind: input, shape index: {}]
  %s1 = inlined_call_operand.vmem [shape: f32[2,32,128], index: 1, kind: input, shape index: {}]
  %s2 = inlined_call_operand.vmem [shape: f32[2,8,4,32], index: 2, kind: output, shape index: {}]
  %s3 = sld [smem:[#allocation0]]
  $region45: #{lstm_bidirectional.1} parent=0
    _
  %s5 = ssub.s32 1, %s3
  %s6 = scalar_select 0, %s5, %s3
  loop: start=0, step=1, limit=4
  $region2: #{lstm_bidirectional.1} parent=0 // loop_pre_header
    _
  $region3: #{lstm_bidirectional.1} parent=0 // loop_header
    %s8 = sphi 0, %s12
    %p9 = scmp.ge.s32.totalorder %s8, 4
    %s15 = sphi 0, %s27
    %s16 = sphi 0, %s23
    %s17 = sphi 0, %s15
    %s18 = sphi 0, %s16
    %s19 = sphi 0, %s17
    %s20 = sphi 0, %s18
    %s32 = sphi 0, %s34
    %s35 = sphi 0, %s32
    %s36 = sphi 0, %s35
    %s52 = sphi 0, %s36
    %s58 = sphi 0, %s60
    %s61 = sphi 0, %s58
    %s62 = sphi 0, %s61
    %s78 = sphi 0, %s62
    %s86 = sphi 0, %s88
    %s89 = sphi 0, %s86
    %s90 = sphi 0, %s89
    %s106 = sphi 0, %s90
  $region4: #{lstm_bidirectional.1} parent=0 // loop_header_branch
    %11 = sbr.rel (%p9) target = $region8
  $region5: #{lstm_bidirectional.1} parent=0 // loop_body
    %s13 = ssub.s32 %s8, 1
    %s14 = ssub.s32 %s8, 2
    %s21 = sadd.s32 1, %s16
    %p22 = scmp.ge.s32.totalorder %s21, 1
    %s23 = scalar_select %p22, 0, %s21
    %s24 = sadd.s32 1, %s15
    %s25 = scalar_select %p22, %s24, %s15
    %p26 = scmp.ge.s32.totalorder %s25, 2
    %s27 = scalar_select %p26, 0, %s25
    %s28 = ssub.s32 %s15, %s27
    %s29 = ssub.s32 %s16, %s23
    %s30 = sor.u32 %s28, %s29
    %p31 = scmp.eq.s32.totalorder %s30, 0
    %s33 = sadd.s32 %s32, 1
    %s34 = scalar_select %p31, %s32, %s33
    %p37 = pneg %p31
    %p38 = scmp.eq.s32.totalorder %s8, 1
    %p39 = por %p37, %p38
    %p40 = scmp.ne.s32.totalorder %s32, %s35
    %p41 = scmp.eq.s32.totalorder %s8, 0
    %p42 = por %p40, %p41
    %p43 = scmp.ne.s32.totalorder %s32, %s35
    %p44 = scmp.eq.s32.totalorder %s13, 1
    %p45 = por %p43, %p44
    %p46 = scmp.ne.s32.totalorder %s35, %s36
    %p47 = scmp.eq.s32.totalorder %s13, 0
    %p48 = por %p46, %p47
    %p49 = scmp.ne.s32.totalorder %s35, %s36
    %p50 = scmp.eq.s32.totalorder %s14, 1
    %p51 = por %p49, %p50
    %p53 = scmp.ne.s32.totalorder %s36, %s52
    %p54 = scmp.eq.s32.totalorder %s14, 0
    %p55 = por %p53, %p54
    %s56 = ssub.s32 %s15, %s27
    %p57 = scmp.eq.s32.totalorder %s56, 0
    %s59 = sadd.s32 %s58, 1
    %s60 = scalar_select %p57, %s58, %s59
    %p63 = pneg %p57
    %p64 = scmp.eq.s32.totalorder %s8, 1
    %p65 = por %p63, %p64
    %p66 = scmp.ne.s32.totalorder %s58, %s61
    %p67 = scmp.eq.s32.totalorder %s8, 0
    %p68 = por %p66, %p67
    %p69 = scmp.ne.s32.totalorder %s58, %s61
    %p70 = scmp.eq.s32.totalorder %s13, 1
    %p71 = por %p69, %p70
    %p72 = scmp.ne.s32.totalorder %s61, %s62
    %p73 = scmp.eq.s32.totalorder %s13, 0
    %p74 = por %p72, %p73
    %p75 = scmp.ne.s32.totalorder %s61, %s62
    %p76 = scmp.eq.s32.totalorder %s14, 1
    %p77 = por %p75, %p76
    %p79 = scmp.ne.s32.totalorder %s62, %s78
    %p80 = scmp.eq.s32.totalorder %s14, 0
    %p81 = por %p79, %p80
    %s82 = ssub.s32 %s15, %s27
    %s83 = ssub.s32 %s16, %s23
    %s84 = sor.u32 %s82, %s83
    %p85 = scmp.eq.s32.totalorder %s84, 0
    %s87 = sadd.s32 %s86, 1
    %s88 = scalar_select %p85, %s86, %s87
    %p91 = pneg %p85
    %p92 = scmp.eq.s32.totalorder %s8, 1
    %p93 = por %p91, %p92
    %p94 = scmp.ne.s32.totalorder %s86, %s89
    %p95 = scmp.eq.s32.totalorder %s8, 0
    %p96 = por %p94, %p95
    %p97 = scmp.ne.s32.totalorder %s86, %s89
    %p98 = scmp.eq.s32.totalorder %s13, 1
    %p99 = por %p97, %p98
    %p100 = scmp.ne.s32.totalorder %s89, %s90
    %p101 = scmp.eq.s32.totalorder %s13, 0
    %p102 = por %p100, %p101
    %p103 = scmp.ne.s32.totalorder %s89, %s90
    %p104 = scmp.eq.s32.totalorder %s14, 1
    %p105 = por %p103, %p104
    %p107 = scmp.ne.s32.totalorder %s90, %s106
    %p108 = scmp.eq.s32.totalorder %s14, 0
    %p109 = por %p107, %p108
    %p110 = scmp.le.s32.totalorder 1, %s8
    %p111 = scmp.lt.s32.totalorder %s8, 3
    %p112 = pnand %p110, %p111
    %p113 = pneg %p112
    // Predicated region
    $region9: #{lstm_bidirectional.1} parent=5 // pred_check
      _
    $region10: #{lstm_bidirectional.1} parent=5 // pred_check_branch
      %115 = sbr.rel (%p112) target = $region12
    $region11: #{lstm_bidirectional.1} parent=5 // pred_region
      %s116 = ssub.s32 %s8, 1
    $region12: #{lstm_bidirectional.1} parent=5 // pred_fallthru
      _
    %p117 = scmp.lt.s32.totalorder %s8, 2
    // Predicated region
    $region13: #{lstm_bidirectional.1} parent=5 // pred_check
      %p118 = pneg %p117
    $region14: #{lstm_bidirectional.1} parent=5 // pred_check_branch
      %120 = sbr.rel (%p118) target = $region16
    $region15: #{lstm_bidirectional.1} parent=5 // pred_region
      // Predicated region
      $region17: #{lstm_bidirectional.1} parent=15 // pred_check
        %p121 = pneg %p42
      $region18: #{lstm_bidirectional.1} parent=15 // pred_check_branch
        %123 = sbr.rel (%p121) target = $region20
      $region19: #{lstm_bidirectional.1} parent=15 // pred_region
        %s124 = smul.u32 8, %s16
        %p125 = scmp.lt.s32.totalorder %s15, 1
        %s126 = scalar_select %p125, %s15, 1
        %p127 = scmp.lt.s32.totalorder %s124, 7
        %s128 = scalar_select %p127, %s124, 7
        %s129 = smul.addr %s126, 8
        %s130 = sadd.s32 %s128, %s129
        %s131 = smul.addr %s130, 4
        %s132 = scalar_lea.vmem %s0, %s131
        %s133 = smul.u32 8, %s16
      $region20: #{lstm_bidirectional.1} parent=15 // pred_fallthru
        _
      // Predicated region
      $region21: #{lstm_bidirectional.1} parent=15 // pred_check
        %p134 = pneg %p68
      $region22: #{lstm_bidirectional.1} parent=15 // pred_check_branch
        %136 = sbr.rel (%p134) target = $region24
      $region23: #{lstm_bidirectional.1} parent=15 // pred_region
        %p137 = scmp.lt.s32.totalorder %s15, 1
        %s138 = scalar_select %p137, %s15, 1
        %s139 = smul.addr %s138, 4
        %s140 = smul.addr %s139, 8
        %s141 = scalar_lea.vmem %s1, %s140
      $region24: #{lstm_bidirectional.1} parent=15 // pred_fallthru
        _
    $region16: #{lstm_bidirectional.1} parent=5 // pred_fallthru
      _
    %p142 = scmp.le.s32.totalorder 1, %s8
    %p143 = scmp.lt.s32.totalorder %s8, 3
    %p144 = pnand %p142, %p143
    %p145 = pneg %p144
    // Predicated region
    $region25: #{lstm_bidirectional.1} parent=5 // pred_check
      _
    $region26: #{lstm_bidirectional.1} parent=5 // pred_check_branch
      %147 = sbr.rel (%p144) target = $region28
    $region27: #{lstm_bidirectional.1} parent=5 // pred_region
      %s148 = ssub.s32 %s8, 1
      %s149 = smul.u32 8, %s18
      %p150 = scmp.lt.s32.totalorder %s17, 1
      %s151 = scalar_select %p150, %s17, 1
      %p152 = scmp.lt.s32.totalorder %s149, 7
      %s153 = scalar_select %p152, %s149, 7
      %s154 = smul.addr %s151, 8
      %s155 = sadd.s32 %s153, %s154
      %s156 = smul.addr %s155, 4
      %s157 = scalar_lea.vmem %s0, %s156
      %p158 = pneg %p48
      %p159 = pneg %p45
      %p160 = scmp.lt.s32.totalorder %s17, 1
      %s161 = scalar_select %p160, %s17, 1
      %s162 = smul.addr %s161, 4
      %s163 = smul.addr %s162, 8
      %s164 = scalar_lea.vmem %s1, %s163
      %p165 = pneg %p74
      %p166 = pneg %p71
      %p167 = pneg %p102
      %p168 = pneg %p99
      %s169 = smul.u32 8, %s18
      %p170 = scmp.lt.s32.totalorder %s17, 1
      %s171 = scalar_select %p170, %s17, 1
      %p172 = scmp.lt.s32.totalorder %s169, 7
      %s173 = scalar_select %p172, %s169, 7
      %s174 = smul.addr %s171, 8
      %s175 = sadd.s32 %s173, %s174
      %s176 = smul.addr %s175, 4
      %s177 = scalar_lea.vmem %s2, %s176
      %s178 = smul.u32 8, %s18
      %p179 = scmp.lt.s32.totalorder %s17, 1
      %s180 = scalar_select %p179, %s17, 1
      %p181 = scmp.lt.s32.totalorder %s178, 7
      %s182 = scalar_select %p181, %s178, 7
      %s183 = smul.addr %s180, 8
      %s184 = sadd.s32 %s182, %s183
      %s185 = smul.addr %s184, 4
      %s186 = scalar_lea.vmem %s0, %s185
      %s187 = smul.u32 8, %s18
      %p188 = scmp.lt.s32.totalorder %s17, 1
      %s189 = scalar_select %p188, %s17, 1
      %s190 = smul.addr %s189, 4
      %s191 = smul.addr %s190, 8
      %s192 = scalar_lea.vmem %s1, %s191
      %s193 = smul.u32 8, %s18
      %p194 = scmp.lt.s32.totalorder %s17, 1
      %s195 = scalar_select %p194, %s17, 1
      %p196 = scmp.lt.s32.totalorder %s193, 7
      %s197 = scalar_select %p196, %s193, 7
      %s198 = smul.addr %s195, 8
      %s199 = sadd.s32 %s197, %s198
      %s200 = smul.addr %s199, 4
      %s201 = scalar_lea.vmem %s2, %s200
      %s202 = smul.u32 8, %s18
      %p203 = scmp.eq.s32.totalorder %s18, 0
      // Predicated region
      $region29: #{lstm_bidirectional.1} parent=27 // pred_check
        %p204 = pneg %p203
      $region30: #{lstm_bidirectional.1} parent=27 // pred_check_branch
        %206 = sbr.rel (%p204) target = $region32
      $region31: #{lstm_bidirectional.1} parent=27 // pred_region
        %vm207 = vcmask 257024
        %208 = vst.msk [vmem:[#allocation2] sm:$0xf] %vm207, 0.0
        %209 = vst.msk [vmem:[#allocation3] sm:$0xf] %vm207, 0.0
      $region32: #{lstm_bidirectional.1} parent=27 // pred_fallthru
        _
      %v210 = vld [vmem:[%s192] sm:$0xff]
      %v211 = vld [vmem:[%s192 + $0x8] sm:$0xff]
      %v212 = vld [vmem:[%s192 + $0x10] sm:$0xff]
      %v213 = vld [vmem:[%s192 + $0x18] sm:$0xff]
      %v214 = vld [vmem:[#allocation2] sm:$0xf]
      %v215 = vld [vmem:[#allocation3] sm:$0xf]
      %v216 = vld [vmem:[%s186] sm:$0xf]
      %vm217 = vcmask 261120
      %v219 = vsel %vm217, %v214, 0
      %221 = vmatpush.msra.mxu0 0.0
      %222 = vmatpush.msra.mxu0 0.0
      %223 = vmatpush.msra.mxu0 0.0
      %224 = vmatpush.msra.mxu0 0.0
      %225 = vmatpush.msra.mxu0 0.0
      %226 = vmatpush.msra.mxu0 0.0
      %227 = vmatpush.msra.mxu0 0.0
      %228 = vmatpush.msra.mxu0 0.0
      %229 = vmatpush.msra.mxu0 0.0
      %230 = vmatpush.msra.mxu0 0.0
      %231 = vmatpush.msra.mxu0 0.0
      %232 = vmatpush.msra.mxu0 0.0
      %233 = vmatpush.msra.mxu0 %v213
      %234 = vmatpush.msra.mxu0 %v212
      %235 = vmatpush.msra.mxu0 %v211
      %236 = vmatpush.msra.mxu0 %v210
      %237 = vmatmul.f32.gmra.mxu0 %v219
      %v238 = vpop.f32.mrf.mxu0
      %v239 = vadd.f32 0.0, %v238
      %240 = vdwg.mxu0
      %v241 = vadd.f32 %v216, %v239
      %v242 = vxor.u32 %v241, 2147483648
      %v243 = vmul.f32 %v242, 1.442695
      %v244 = vpow.pop %v243
      %v245 = vadd.f32 %v244, 1.0
      %v246 = vrcp.pop %v245
      %v247 = vmul.f32 %v245, %v246
      %v248 = vsub.f32 1.0, %v247
      %v249 = vmul.f32 %v246, %v248
      %v250 = vadd.f32 %v246, %v249
      %vm251 = vweird.f32 %v245
      %vm252 = vweird.f32 %v246
      %vm253 = vmor %vm251, %vm252
      %v254 = vsel %vm253, %v246, %v250
      %v255 = vand.u32 2147483647, %v245
      %vm256 = vcmp.eq.f32.partialorder %v255, 8.507059e+37
      %v257 = vand.u32 %v245, 2147483648
      %v258 = vor.u32 1.1754944e-38, %v257
      %v259 = vsel %vm256, %v258, %v254
      %v260 = vmul.f32 1.0, %v259
      %v261 = vtanh.pop %v241
      %263 = vrot.lane.b32.xlu0 %v215, 32
      %v264 = vpop.permute.xlu0 %263
      %v266 = vmul.f32 %v260, %v264
      %268 = vrot.lane.b32.xlu0 %v261, 64
      %v269 = vpop.permute.xlu0 %268
      %v271 = vmul.f32 %v260, %v269
      %273 = vrot.lane.b32.xlu0 %v271, 32
      %v274 = vpop.permute.xlu0 %273
      %v276 = vadd.f32 %v266, %v274
      %v277 = vtanh.pop %v276
      %279 = vrot.lane.b32.xlu0 %v277, 64
      %v280 = vpop.permute.xlu0 %279
      %v282 = vmul.f32 %v260, %v280
      %284 = vrot.lane.b32.xlu0 %v282, 32
      %v285 = vpop.permute.xlu0 %284
      %vm287 = vcmask 257024
      %288 = vst.msk [vmem:[%s201] sm:$0xf] %vm287, %v285
      %s289 = scalar_lea.vmem %s186, 4
      %v290 = vld [vmem:[%s289] sm:$0xf]
      %v291 = vsel %vm217, %v285, 0
      %293 = vmatpush.msra.mxu0 0.0
      %294 = vmatpush.msra.mxu0 0.0
      %295 = vmatpush.msra.mxu0 0.0
      %296 = vmatpush.msra.mxu0 0.0
      %297 = vmatpush.msra.mxu0 0.0
      %298 = vmatpush.msra.mxu0 0.0
      %299 = vmatpush.msra.mxu0 0.0
      %300 = vmatpush.msra.mxu0 0.0
      %301 = vmatpush.msra.mxu0 0.0
      %302 = vmatpush.msra.mxu0 0.0
      %303 = vmatpush.msra.mxu0 0.0
      %304 = vmatpush.msra.mxu0 0.0
      %305 = vmatpush.msra.mxu0 %v213
      %306 = vmatpush.msra.mxu0 %v212
      %307 = vmatpush.msra.mxu0 %v211
      %308 = vmatpush.msra.mxu0 %v210
      %309 = vmatmul.f32.gmra.mxu0 %v291
      %v310 = vpop.f32.mrf.mxu0
      %v311 = vadd.f32 0.0, %v310
      %312 = vdwg.mxu0
      %v313 = vadd.f32 %v290, %v311
      %v314 = vxor.u32 %v313, 2147483648
      %v315 = vmul.f32 %v314, 1.442695
      %v316 = vpow.pop %v315
      %v317 = vadd.f32 %v316, 1.0
      %v318 = vrcp.pop %v317
      %v319 = vmul.f32 %v317, %v318
      %v320 = vsub.f32 1.0, %v319
      %v321 = vmul.f32 %v318, %v320
      %v322 = vadd.f32 %v318, %v321
      %vm323 = vweird.f32 %v317
      %vm324 = vweird.f32 %v318
      %vm325 = vmor %vm323, %vm324
      %v326 = vsel %vm325, %v318, %v322
      %v327 = vand.u32 2147483647, %v317
      %vm328 = vcmp.eq.f32.partialorder %v327, 8.507059e+37
      %v329 = vand.u32 %v317, 2147483648
      %v330 = vor.u32 1.1754944e-38, %v329
      %v331 = vsel %vm328, %v330, %v326
      %v332 = vmul.f32 1.0, %v331
      %v333 = vtanh.pop %v313
      %v334 = vmul.f32 %v332, %v276
      %336 = vrot.lane.b32.xlu0 %v333, 64
      %v337 = vpop.permute.xlu0 %336
      %v339 = vmul.f32 %v332, %v337
      %341 = vrot.lane.b32.xlu0 %v339, 32
      %v342 = vpop.permute.xlu0 %341
      %v344 = vadd.f32 %v334, %v342
      %v345 = vtanh.pop %v344
      %347 = vrot.lane.b32.xlu0 %v345, 64
      %v348 = vpop.permute.xlu0 %347
      %v350 = vmul.f32 %v332, %v348
      %352 = vrot.lane.b32.xlu0 %v350, 32
      %v353 = vpop.permute.xlu0 %352
      %s355 = scalar_lea.vmem %s201, 4
      %356 = vst.msk [vmem:[%s355] sm:$0xf] %vm287, %v353
      %s357 = scalar_lea.vmem %s186, 8
      %v358 = vld [vmem:[%s357] sm:$0xf]
      %v359 = vsel %vm217, %v353, 0
      %361 = vmatpush.msra.mxu0 0.0
      %362 = vmatpush.msra.mxu0 0.0
      %363 = vmatpush.msra.mxu0 0.0
      %364 = vmatpush.msra.mxu0 0.0
      %365 = vmatpush.msra.mxu0 0.0
      %366 = vmatpush.msra.mxu0 0.0
      %367 = vmatpush.msra.mxu0 0.0
      %368 = vmatpush.msra.mxu0 0.0
      %369 = vmatpush.msra.mxu0 0.0
      %370 = vmatpush.msra.mxu0 0.0
      %371 = vmatpush.msra.mxu0 0.0
      %372 = vmatpush.msra.mxu0 0.0
      %373 = vmatpush.msra.mxu0 %v213
      %374 = vmatpush.msra.mxu0 %v212
      %375 = vmatpush.msra.mxu0 %v211
      %376 = vmatpush.msra.mxu0 %v210
      %377 = vmatmul.f32.gmra.mxu0 %v359
      %v378 = vpop.f32.mrf.mxu0
      %v379 = vadd.f32 0.0, %v378
      %380 = vdwg.mxu0
      %v381 = vadd.f32 %v358, %v379
      %v382 = vxor.u32 %v381, 2147483648
      %v383 = vmul.f32 %v382, 1.442695
      %v384 = vpow.pop %v383
      %v385 = vadd.f32 %v384, 1.0
      %v386 = vrcp.pop %v385
      %v387 = vmul.f32 %v385, %v386
      %v388 = vsub.f32 1.0, %v387
      %v389 = vmul.f32 %v386, %v388
      %v390 = vadd.f32 %v386, %v389
      %vm391 = vweird.f32 %v385
      %vm392 = vweird.f32 %v386
      %vm393 = vmor %vm391, %vm392
      %v394 = vsel %vm393, %v386, %v390
      %v395 = vand.u32 2147483647, %v385
      %vm396 = vcmp.eq.f32.partialorder %v395, 8.507059e+37
      %v397 = vand.u32 %v385, 2147483648
      %v398 = vor.u32 1.1754944e-38, %v397
      %v399 = vsel %vm396, %v398, %v394
      %v400 = vmul.f32 1.0, %v399
      %v401 = vtanh.pop %v381
      %v402 = vmul.f32 %v400, %v344
      %404 = vrot.lane.b32.xlu0 %v401, 64
      %v405 = vpop.permute.xlu0 %404
      %v407 = vmul.f32 %v400, %v405
      %409 = vrot.lane.b32.xlu0 %v407, 32
      %v410 = vpop.permute.xlu0 %409
      %v412 = vadd.f32 %v402, %v410
      %v413 = vtanh.pop %v412
      %415 = vrot.lane.b32.xlu0 %v413, 64
      %v416 = vpop.permute.xlu0 %415
      %v418 = vmul.f32 %v400, %v416
      %420 = vrot.lane.b32.xlu0 %v418, 32
      %v421 = vpop.permute.xlu0 %420
      %s423 = scalar_lea.vmem %s201, 8
      %424 = vst.msk [vmem:[%s423] sm:$0xf] %vm287, %v421
      %s425 = scalar_lea.vmem %s186, 12
      %v426 = vld [vmem:[%s425] sm:$0xf]
      %v427 = vsel %vm217, %v421, 0
      %429 = vmatpush.msra.mxu0 0.0
      %430 = vmatpush.msra.mxu0 0.0
      %431 = vmatpush.msra.mxu0 0.0
      %432 = vmatpush.msra.mxu0 0.0
      %433 = vmatpush.msra.mxu0 0.0
      %434 = vmatpush.msra.mxu0 0.0
      %435 = vmatpush.msra.mxu0 0.0
      %436 = vmatpush.msra.mxu0 0.0
      %437 = vmatpush.msra.mxu0 0.0
      %438 = vmatpush.msra.mxu0 0.0
      %439 = vmatpush.msra.mxu0 0.0
      %440 = vmatpush.msra.mxu0 0.0
      %441 = vmatpush.msra.mxu0 %v213
      %442 = vmatpush.msra.mxu0 %v212
      %443 = vmatpush.msra.mxu0 %v211
      %444 = vmatpush.msra.mxu0 %v210
      %445 = vmatmul.f32.gmra.mxu0 %v427
      %v446 = vpop.f32.mrf.mxu0
      %v447 = vadd.f32 0.0, %v446
      %448 = vdwg.mxu0
      %v449 = vadd.f32 %v426, %v447
      %v450 = vxor.u32 %v449, 2147483648
      %v451 = vmul.f32 %v450, 1.442695
      %v452 = vpow.pop %v451
      %v453 = vadd.f32 %v452, 1.0
      %v454 = vrcp.pop %v453
      %v455 = vmul.f32 %v453, %v454
      %v456 = vsub.f32 1.0, %v455
      %v457 = vmul.f32 %v454, %v456
      %v458 = vadd.f32 %v454, %v457
      %vm459 = vweird.f32 %v453
      %vm460 = vweird.f32 %v454
      %vm461 = vmor %vm459, %vm460
      %v462 = vsel %vm461, %v454, %v458
      %v463 = vand.u32 2147483647, %v453
      %vm464 = vcmp.eq.f32.partialorder %v463, 8.507059e+37
      %v465 = vand.u32 %v453, 2147483648
      %v466 = vor.u32 1.1754944e-38, %v465
      %v467 = vsel %vm464, %v466, %v462
      %v468 = vmul.f32 1.0, %v467
      %v469 = vtanh.pop %v449
      %v470 = vmul.f32 %v468, %v412
      %472 = vrot.lane.b32.xlu0 %v469, 64
      %v473 = vpop.permute.xlu0 %472
      %v475 = vmul.f32 %v468, %v473
      %477 = vrot.lane.b32.xlu0 %v475, 32
      %v478 = vpop.permute.xlu0 %477
      %v480 = vadd.f32 %v470, %v478
      %v481 = vtanh.pop %v480
      %483 = vrot.lane.b32.xlu0 %v481, 64
      %v484 = vpop.permute.xlu0 %483
      %v486 = vmul.f32 %v468, %v484
      %488 = vrot.lane.b32.xlu0 %v486, 32
      %v489 = vpop.permute.xlu0 %488
      %s491 = scalar_lea.vmem %s201, 12
      %492 = vst.msk [vmem:[%s491] sm:$0xf] %vm287, %v489
      %s493 = scalar_lea.vmem %s186, 16
      %v494 = vld [vmem:[%s493] sm:$0xf]
      %v495 = vsel %vm217, %v489, 0
      %497 = vmatpush.msra.mxu0 0.0
      %498 = vmatpush.msra.mxu0 0.0
      %499 = vmatpush.msra.mxu0 0.0
      %500 = vmatpush.msra.mxu0 0.0
      %501 = vmatpush.msra.mxu0 0.0
      %502 = vmatpush.msra.mxu0 0.0
      %503 = vmatpush.msra.mxu0 0.0
      %504 = vmatpush.msra.mxu0 0.0
      %505 = vmatpush.msra.mxu0 0.0
      %506 = vmatpush.msra.mxu0 0.0
      %507 = vmatpush.msra.mxu0 0.0
      %508 = vmatpush.msra.mxu0 0.0
      %509 = vmatpush.msra.mxu0 %v213
      %510 = vmatpush.msra.mxu0 %v212
      %511 = vmatpush.msra.mxu0 %v211
      %512 = vmatpush.msra.mxu0 %v210
      %513 = vmatmul.f32.gmra.mxu0 %v495
      %v514 = vpop.f32.mrf.mxu0
      %v515 = vadd.f32 0.0, %v514
      %516 = vdwg.mxu0
      %v517 = vadd.f32 %v494, %v515
      %v518 = vxor.u32 %v517, 2147483648
      %v519 = vmul.f32 %v518, 1.442695
      %v520 = vpow.pop %v519
      %v521 = vadd.f32 %v520, 1.0
      %v522 = vrcp.pop %v521
      %v523 = vmul.f32 %v521, %v522
      %v524 = vsub.f32 1.0, %v523
      %v525 = vmul.f32 %v522, %v524
      %v526 = vadd.f32 %v522, %v525
      %vm527 = vweird.f32 %v521
      %vm528 = vweird.f32 %v522
      %vm529 = vmor %vm527, %vm528
      %v530 = vsel %vm529, %v522, %v526
      %v531 = vand.u32 2147483647, %v521
      %vm532 = vcmp.eq.f32.partialorder %v531, 8.507059e+37
      %v533 = vand.u32 %v521, 2147483648
      %v534 = vor.u32 1.1754944e-38, %v533
      %v535 = vsel %vm532, %v534, %v530
      %v536 = vmul.f32 1.0, %v535
      %v537 = vtanh.pop %v517
      %v538 = vmul.f32 %v536, %v480
      %540 = vrot.lane.b32.xlu0 %v537, 64
      %v541 = vpop.permute.xlu0 %540
      %v543 = vmul.f32 %v536, %v541
      %545 = vrot.lane.b32.xlu0 %v543, 32
      %v546 = vpop.permute.xlu0 %545
      %v548 = vadd.f32 %v538, %v546
      %v549 = vtanh.pop %v548
      %551 = vrot.lane.b32.xlu0 %v549, 64
      %v552 = vpop.permute.xlu0 %551
      %v554 = vmul.f32 %v536, %v552
      %556 = vrot.lane.b32.xlu0 %v554, 32
      %v557 = vpop.permute.xlu0 %556
      %s559 = scalar_lea.vmem %s201, 16
      %560 = vst.msk [vmem:[%s559] sm:$0xf] %vm287, %v557
      %s561 = scalar_lea.vmem %s186, 20
      %v562 = vld [vmem:[%s561] sm:$0xf]
      %v563 = vsel %vm217, %v557, 0
      %565 = vmatpush.msra.mxu0 0.0
      %566 = vmatpush.msra.mxu0 0.0
      %567 = vmatpush.msra.mxu0 0.0
      %568 = vmatpush.msra.mxu0 0.0
      %569 = vmatpush.msra.mxu0 0.0
      %570 = vmatpush.msra.mxu0 0.0
      %571 = vmatpush.msra.mxu0 0.0
      %572 = vmatpush.msra.mxu0 0.0
      %573 = vmatpush.msra.mxu0 0.0
      %574 = vmatpush.msra.mxu0 0.0
      %575 = vmatpush.msra.mxu0 0.0
      %576 = vmatpush.msra.mxu0 0.0
      %577 = vmatpush.msra.mxu0 %v213
      %578 = vmatpush.msra.mxu0 %v212
      %579 = vmatpush.msra.mxu0 %v211
      %580 = vmatpush.msra.mxu0 %v210
      %581 = vmatmul.f32.gmra.mxu0 %v563
      %v582 = vpop.f32.mrf.mxu0
      %v583 = vadd.f32 0.0, %v582
      %584 = vdwg.mxu0
      %v585 = vadd.f32 %v562, %v583
      %v586 = vxor.u32 %v585, 2147483648
      %v587 = vmul.f32 %v586, 1.442695
      %v588 = vpow.pop %v587
      %v589 = vadd.f32 %v588, 1.0
      %v590 = vrcp.pop %v589
      %v591 = vmul.f32 %v589, %v590
      %v592 = vsub.f32 1.0, %v591
      %v593 = vmul.f32 %v590, %v592
      %v594 = vadd.f32 %v590, %v593
      %vm595 = vweird.f32 %v589
      %vm596 = vweird.f32 %v590
      %vm597 = vmor %vm595, %vm596
      %v598 = vsel %vm597, %v590, %v594
      %v599 = vand.u32 2147483647, %v589
      %vm600 = vcmp.eq.f32.partialorder %v599, 8.507059e+37
      %v601 = vand.u32 %v589, 2147483648
      %v602 = vor.u32 1.1754944e-38, %v601
      %v603 = vsel %vm600, %v602, %v598
      %v604 = vmul.f32 1.0, %v603
      %v605 = vtanh.pop %v585
      %v606 = vmul.f32 %v604, %v548
      %608 = vrot.lane.b32.xlu0 %v605, 64
      %v609 = vpop.permute.xlu0 %608
      %v611 = vmul.f32 %v604, %v609
      %613 = vrot.lane.b32.xlu0 %v611, 32
      %v614 = vpop.permute.xlu0 %613
      %v616 = vadd.f32 %v606, %v614
      %v617 = vtanh.pop %v616
      %619 = vrot.lane.b32.xlu0 %v617, 64
      %v620 = vpop.permute.xlu0 %619
      %v622 = vmul.f32 %v604, %v620
      %624 = vrot.lane.b32.xlu0 %v622, 32
      %v625 = vpop.permute.xlu0 %624
      %s627 = scalar_lea.vmem %s201, 20
      %628 = vst.msk [vmem:[%s627] sm:$0xf] %vm287, %v625
      %s629 = scalar_lea.vmem %s186, 24
      %v630 = vld [vmem:[%s629] sm:$0xf]
      %v631 = vsel %vm217, %v625, 0
      %633 = vmatpush.msra.mxu0 0.0
      %634 = vmatpush.msra.mxu0 0.0
      %635 = vmatpush.msra.mxu0 0.0
      %636 = vmatpush.msra.mxu0 0.0
      %637 = vmatpush.msra.mxu0 0.0
      %638 = vmatpush.msra.mxu0 0.0
      %639 = vmatpush.msra.mxu0 0.0
      %640 = vmatpush.msra.mxu0 0.0
      %641 = vmatpush.msra.mxu0 0.0
      %642 = vmatpush.msra.mxu0 0.0
      %643 = vmatpush.msra.mxu0 0.0
      %644 = vmatpush.msra.mxu0 0.0
      %645 = vmatpush.msra.mxu0 %v213
      %646 = vmatpush.msra.mxu0 %v212
      %647 = vmatpush.msra.mxu0 %v211
      %648 = vmatpush.msra.mxu0 %v210
      %649 = vmatmul.f32.gmra.mxu0 %v631
      %v650 = vpop.f32.mrf.mxu0
      %v651 = vadd.f32 0.0, %v650
      %652 = vdwg.mxu0
      %v653 = vadd.f32 %v630, %v651
      %v654 = vxor.u32 %v653, 2147483648
      %v655 = vmul.f32 %v654, 1.442695
      %v656 = vpow.pop %v655
      %v657 = vadd.f32 %v656, 1.0
      %v658 = vrcp.pop %v657
      %v659 = vmul.f32 %v657, %v658
      %v660 = vsub.f32 1.0, %v659
      %v661 = vmul.f32 %v658, %v660
      %v662 = vadd.f32 %v658, %v661
      %vm663 = vweird.f32 %v657
      %vm664 = vweird.f32 %v658
      %vm665 = vmor %vm663, %vm664
      %v666 = vsel %vm665, %v658, %v662
      %v667 = vand.u32 2147483647, %v657
      %vm668 = vcmp.eq.f32.partialorder %v667, 8.507059e+37
      %v669 = vand.u32 %v657, 2147483648
      %v670 = vor.u32 1.1754944e-38, %v669
      %v671 = vsel %vm668, %v670, %v666
      %v672 = vmul.f32 1.0, %v671
      %v673 = vtanh.pop %v653
      %v674 = vmul.f32 %v672, %v616
      %676 = vrot.lane.b32.xlu0 %v673, 64
      %v677 = vpop.permute.xlu0 %676
      %v679 = vmul.f32 %v672, %v677
      %681 = vrot.lane.b32.xlu0 %v679, 32
      %v682 = vpop.permute.xlu0 %681
      %v684 = vadd.f32 %v674, %v682
      %v685 = vtanh.pop %v684
      %687 = vrot.lane.b32.xlu0 %v685, 64
      %v688 = vpop.permute.xlu0 %687
      %v690 = vmul.f32 %v672, %v688
      %692 = vrot.lane.b32.xlu0 %v690, 32
      %v693 = vpop.permute.xlu0 %692
      %s695 = scalar_lea.vmem %s201, 24
      %696 = vst.msk [vmem:[%s695] sm:$0xf] %vm287, %v693
      %s697 = scalar_lea.vmem %s186, 28
      %v698 = vld [vmem:[%s697] sm:$0xf]
      %v699 = vsel %vm217, %v693, 0
      %701 = vmatpush.msra.mxu0 0.0
      %702 = vmatpush.msra.mxu0 0.0
      %703 = vmatpush.msra.mxu0 0.0
      %704 = vmatpush.msra.mxu0 0.0
      %705 = vmatpush.msra.mxu0 0.0
      %706 = vmatpush.msra.mxu0 0.0
      %707 = vmatpush.msra.mxu0 0.0
      %708 = vmatpush.msra.mxu0 0.0
      %709 = vmatpush.msra.mxu0 0.0
      %710 = vmatpush.msra.mxu0 0.0
      %711 = vmatpush.msra.mxu0 0.0
      %712 = vmatpush.msra.mxu0 0.0
      %713 = vmatpush.msra.mxu0 %v213
      %714 = vmatpush.msra.mxu0 %v212
      %715 = vmatpush.msra.mxu0 %v211
      %716 = vmatpush.msra.mxu0 %v210
      %717 = vmatmul.f32.gmra.mxu0 %v699
      %v718 = vpop.f32.mrf.mxu0
      %v719 = vadd.f32 0.0, %v718
      %720 = vdwg.mxu0
      %v721 = vadd.f32 %v698, %v719
      %v722 = vxor.u32 %v721, 2147483648
      %v723 = vmul.f32 %v722, 1.442695
      %v724 = vpow.pop %v723
      %v725 = vadd.f32 %v724, 1.0
      %v726 = vrcp.pop %v725
      %v727 = vmul.f32 %v725, %v726
      %v728 = vsub.f32 1.0, %v727
      %v729 = vmul.f32 %v726, %v728
      %v730 = vadd.f32 %v726, %v729
      %vm731 = vweird.f32 %v725
      %vm732 = vweird.f32 %v726
      %vm733 = vmor %vm731, %vm732
      %v734 = vsel %vm733, %v726, %v730
      %v735 = vand.u32 2147483647, %v725
      %vm736 = vcmp.eq.f32.partialorder %v735, 8.507059e+37
      %v737 = vand.u32 %v725, 2147483648
      %v738 = vor.u32 1.1754944e-38, %v737
      %v739 = vsel %vm736, %v738, %v734
      %v740 = vmul.f32 1.0, %v739
      %v741 = vtanh.pop %v721
      %v742 = vmul.f32 %v740, %v684
      %744 = vrot.lane.b32.xlu0 %v741, 64
      %v745 = vpop.permute.xlu0 %744
      %v747 = vmul.f32 %v740, %v745
      %749 = vrot.lane.b32.xlu0 %v747, 32
      %v750 = vpop.permute.xlu0 %749
      %v752 = vadd.f32 %v742, %v750
      %v753 = vtanh.pop %v752
      %755 = vrot.lane.b32.xlu0 %v753, 64
      %v756 = vpop.permute.xlu0 %755
      %v758 = vmul.f32 %v740, %v756
      %760 = vrot.lane.b32.xlu0 %v758, 32
      %v761 = vpop.permute.xlu0 %760
      %s763 = scalar_lea.vmem %s201, 28
      %764 = vst.msk [vmem:[%s763] sm:$0xf] %vm287, %v761
      %765 = vst.msk [vmem:[#allocation2] sm:$0xf] %vm287, %v761
      %767 = vrot.lane.b32.xlu0 %v752, 96
      %v768 = vpop.permute.xlu0 %767
      %770 = vst.msk [vmem:[#allocation3] sm:$0xf] %vm287, %v768
      %s771 = smul.u32 8, %s18
      %p772 = scmp.lt.s32.totalorder %s17, 1
      %s773 = scalar_select %p772, %s17, 1
      %p774 = scmp.lt.s32.totalorder %s771, 7
      %s775 = scalar_select %p774, %s771, 7
      %s776 = smul.addr %s773, 8
      %s777 = sadd.s32 %s775, %s776
      %s778 = smul.addr %s777, 4
      %s779 = scalar_lea.vmem %s2, %s778
      // Predicated region
      $region33: #{lstm_bidirectional.1} parent=27 // pred_check
        %p780 = pneg %p99
      $region34: #{lstm_bidirectional.1} parent=27 // pred_check_branch
        %782 = sbr.rel (%p780) target = $region36
      $region35: #{lstm_bidirectional.1} parent=27 // pred_region
        %s783 = smul.u32 8, %s18
      $region36: #{lstm_bidirectional.1} parent=27 // pred_fallthru
        _
    $region28: #{lstm_bidirectional.1} parent=5 // pred_fallthru
      _
    %p784 = scmp.le.s32.totalorder 2, %s8
    // Predicated region
    $region37: #{lstm_bidirectional.1} parent=5 // pred_check
      %p785 = pneg %p784
    $region38: #{lstm_bidirectional.1} parent=5 // pred_check_branch
      %787 = sbr.rel (%p785) target = $region40
    $region39: #{lstm_bidirectional.1} parent=5 // pred_region
      %s788 = ssub.s32 %s8, 2
      // Predicated region
      $region41: #{lstm_bidirectional.1} parent=39 // pred_check
        %p789 = pneg %p105
      $region42: #{lstm_bidirectional.1} parent=39 // pred_check_branch
        %791 = sbr.rel (%p789) target = $region44
      $region43: #{lstm_bidirectional.1} parent=39 // pred_region
        %s792 = smul.u32 8, %s20
        %p793 = scmp.lt.s32.totalorder %s19, 1
        %s794 = scalar_select %p793, %s19, 1
        %p795 = scmp.lt.s32.totalorder %s792, 7
        %s796 = scalar_select %p795, %s792, 7
        %s797 = smul.addr %s794, 8
        %s798 = sadd.s32 %s796, %s797
        %s799 = smul.addr %s798, 4
        %s800 = scalar_lea.vmem %s2, %s799
      $region44: #{lstm_bidirectional.1} parent=39 // pred_fallthru
        _
    $region40: #{lstm_bidirectional.1} parent=5 // pred_fallthru
      _
  $region6: #{lstm_bidirectional.1} parent=0 // loop_footer
    %s12 = sadd.s32 1, %s8
  $region7: #{lstm_bidirectional.1} parent=0 // loop_footer_branch
    %7 = sbr.rel target = $region3
  $region8: #{lstm_bidirectional.1} parent=0 // loop_exit
    _

</llo_original>
